<compile_context>
chip_gen: v7x
topology: tpu7x:2x2x1
jax: 0.10.0
libtpu: 0.0.40
codegen_flags: <defaults>
</compile_context>

<pallas_src>
import jax
import jax.numpy as jnp
from jax import lax
from jax.experimental import pallas as pl
from jax.experimental.pallas import tpu as pltpu

# ---- small, module-consistent config ----
B = 4            # batch_size
S = 8            # sent_len
E = 32           # input_size (word_emb_dim; no char / extra features)
H = 32           # HP_hidden_dim
T = 16           # label_alphabet_size
L = 2            # HP_cnn_layer
K = 3            # HP_cnn_kernel (odd), use_idcnn = False path
PAD = (K - 1) // 2
BS = B * S       # batch folded into rows
RT = 16          # row tile: multiple of S (sentence-aligned) and of 8
BN_EPS = 1e-5

assert RT % S == 0 and RT % 8 == 0 and BS % RT == 0

# ---- packed-slab static row offsets ----
# weight slab rows: [word2cnn (E)] [L layers x K taps x H] [hidden2tag (H)]
W_W2C = 0
W_CONV = E                       # layer l, tap k at rows W_CONV + (l*K + k)*H
W_H2T = E + L * K * H
W_ROWS = W_H2T + H               # 256 rows x H lanes
# vector slab rows: w2c_b | conv_b[l] | bn_scale[l] | bn_shift[l] | h2t_b
V_W2C_B = 0
V_CONV_B = 1
V_BN_SCALE = 1 + L
V_BN_SHIFT = 1 + 2 * L
V_H2T_B = 1 + 3 * L
V_ROWS = ((V_H2T_B + 1 + 7) // 8) * 8


def word_sequence_kernel(x_ref, w_ref, v_ref, out_ref):
    x = x_ref[...]                                        # (RT, E)

    # word2cnn linear + tanh
    w2c_w = w_ref[W_W2C:W_W2C + E, :]                     # (E, H)
    w2c_b = v_ref[V_W2C_B:V_W2C_B + 1, :]                 # (1, H)
    h = jnp.tanh(jnp.dot(x, w2c_w, preferred_element_type=jnp.float32) + w2c_b)

    # loop-invariant sequence-boundary masks, pre-broadcast to (RT, H) ONCE.
    # Row tiles are sentence-aligned, so (row % S) is the in-sentence position.
    row = lax.broadcasted_iota(jnp.int32, (RT, H), 0)
    keep_prev = ((row % S) != 0).astype(jnp.float32)       # first token: no left ctx
    keep_next = ((row % S) != (S - 1)).astype(jnp.float32)  # last token: no right ctx

    # CNN stack: conv1d("same") -> ReLU -> dropout(identity, eval) -> BN(eval)
    for l in range(L):                                    # static unroll, L small
        base = W_CONV + l * K * H
        w_prev = w_ref[base:base + H, :]                  # tap 0 -> h[t-1]
        w_cur = w_ref[base + H:base + 2 * H, :]           # tap 1 -> h[t]
        w_next = w_ref[base + 2 * H:base + 3 * H, :]      # tap 2 -> h[t+1]
        b_l = v_ref[V_CONV_B + l:V_CONV_B + l + 1, :]     # (1, H)

        # shifted taps via sublane rolls (XLU); wrapped / cross-sentence rows
        # are zeroed so "same" zero-padding is preserved under batch folding.
        h_prev = keep_prev * pltpu.roll(h, shift=1, axis=0)       # h[t-1]
        h_next = keep_next * pltpu.roll(h, shift=RT - 1, axis=0)  # h[t+1]

        # three accumulating MXU dots (no lane-axis concat)
        acc = jnp.dot(h, w_cur, preferred_element_type=jnp.float32)
        acc = acc + jnp.dot(h_prev, w_prev, preferred_element_type=jnp.float32)
        acc = acc + jnp.dot(h_next, w_next, preferred_element_type=jnp.float32)
        acc = jnp.maximum(acc + b_l, 0.0)                 # bias + ReLU

        if l < L - 1:
            scale_l = v_ref[V_BN_SCALE + l:V_BN_SCALE + l + 1, :]
            shift_l = v_ref[V_BN_SHIFT + l:V_BN_SHIFT + l + 1, :]
            h = acc * scale_l + shift_l                   # BatchNorm1d (eval)
        else:
            h = acc          # last layer's BN folded into hidden2tag host-side

    # hidden2tag (with last-layer BN folded in)
    h2t_w = w_ref[W_H2T:W_H2T + H, :][:, :T]              # (H, T)
    h2t_b = v_ref[V_H2T_B:V_H2T_B + 1, :][:, :T]          # (1, T)
    out_ref[...] = jnp.dot(h, h2t_w, preferred_element_type=jnp.float32) + h2t_b


def pack_params(params):
    """Host-side: fold last-layer BN into hidden2tag; pack weights into 2 slabs."""
    w2c_w, w2c_b, conv_w, conv_b, bn_scale, bn_shift, h2t_w, h2t_b = params

    # exact eval-mode fold of the LAST layer's BN into hidden2tag
    h2t_w_f = bn_scale[L - 1][:, None] * h2t_w            # (H, T)
    h2t_b_f = h2t_b[0] + bn_shift[L - 1] @ h2t_w          # (T,)

    # matmul-weight slab (W_ROWS, H); hidden2tag lane-padded T -> H
    h2t_w_pad = jnp.zeros((H, H), jnp.float32).at[:, :T].set(h2t_w_f)
    w_slab = jnp.concatenate(
        [w2c_w] + [conv_w[l, k] for l in range(L) for k in range(K)] + [h2t_w_pad],
        axis=0)

    # per-channel-vector slab (V_ROWS, H)
    h2t_b_pad = jnp.zeros((H,), jnp.float32).at[:T].set(h2t_b_f)
    v_rows = ([w2c_b[0]] + [conv_b[l] for l in range(L)]
              + [bn_scale[l] for l in range(L)] + [bn_shift[l] for l in range(L)]
              + [h2t_b_pad])
    v_slab = jnp.stack(v_rows, axis=0)
    v_slab = jnp.pad(v_slab, ((0, V_ROWS - v_slab.shape[0]), (0, 0)))

    assert w_slab.shape == (W_ROWS, H) and v_slab.shape == (V_ROWS, H)
    return w_slab, v_slab


def word_sequence_forward(word_represent, params):
    w_slab, v_slab = pack_params(params)
    x2d = word_represent.reshape(BS, E)      # fold batch into rows (sentence-aligned)

    out2d = pl.pallas_call(
        word_sequence_kernel,
        out_shape=jax.ShapeDtypeStruct((BS, T), jnp.float32),
        grid=(BS // RT,),
        in_specs=[
            pl.BlockSpec((RT, E), lambda i: (i, 0)),       # activations: row-tiled
            pl.BlockSpec((W_ROWS, H), lambda i: (0, 0)),   # all matmul weights
            pl.BlockSpec((V_ROWS, H), lambda i: (0, 0)),   # all per-channel vectors
        ],
        out_specs=pl.BlockSpec((RT, T), lambda i: (i, 0)),
        compiler_params=pltpu.CompilerParams(
            dimension_semantics=("parallel",)),            # megacore/v7x-friendly
    )(x2d, w_slab, v_slab)

    return out2d.reshape(B, S, T)


def ref_forward(x, params):
    """Pure-JAX reference (same math as the PyTorch eval forward, unfused params)."""
    w2c_w, w2c_b, conv_w, conv_b, bn_scale, bn_shift, h2t_w, h2t_b = params
    h = jnp.tanh(x @ w2c_w + w2c_b[0])
    for l in range(L):
        hp = jnp.pad(h, ((0, 0), (PAD, PAD), (0, 0)))
        acc = sum(hp[:, j:j + S, :] @ conv_w[l, j] for j in range(K))
        acc = jnp.maximum(acc + conv_b[l], 0.0)
        h = acc * bn_scale[l] + bn_shift[l]
    return h @ h2t_w + h2t_b[0]


def init_params(key):
    ks = jax.random.split(key, 10)
    w2c_w = jax.random.normal(ks[0], (E, H), jnp.float32) * 0.1      # word2cnn.weight^T
    w2c_b = jax.random.normal(ks[1], (1, H), jnp.float32) * 0.1
    # Conv1d weights, tap-major (L, K, in, out).  NOTE: PyTorch Conv1d stores
    # (out, in, K); real checkpoints need transpose(2, 1, 0) per layer.
    conv_w = jax.random.normal(ks[2], (L, K, H, H), jnp.float32) * 0.1
    conv_b = jax.random.normal(ks[3], (L, H), jnp.float32) * 0.1
    gamma = 1.0 + 0.1 * jax.random.normal(ks[4], (L, H), jnp.float32)
    beta = 0.1 * jax.random.normal(ks[5], (L, H), jnp.float32)
    run_mean = 0.1 * jax.random.normal(ks[6], (L, H), jnp.float32)
    run_var = 0.5 + jax.random.uniform(ks[7], (L, H), jnp.float32)
    bn_scale = gamma / jnp.sqrt(run_var + BN_EPS)                    # folded BN (eval)
    bn_shift = beta - run_mean * bn_scale
    h2t_w = jax.random.normal(ks[8], (H, T), jnp.float32) * 0.1      # hidden2tag.weight^T
    h2t_b = jax.random.normal(ks[9], (1, T), jnp.float32) * 0.1
    return (w2c_w, w2c_b, conv_w, conv_b, bn_scale, bn_shift, h2t_w, h2t_b)


if __name__ == "__main__":
    key = jax.random.PRNGKey(0)
    k_in, k_par = jax.random.split(key)
    # word_represent: output of WordRep -> (batch, sent_len, input_size)
    word_represent = jax.random.normal(k_in, (B, S, E), jnp.float32)
    params = init_params(k_par)

    out = word_sequence_forward(word_represent, params)
    out = jax.block_until_ready(out)

    ref = ref_forward(word_represent, params)
    assert out.shape == (B, S, T)
    assert jnp.allclose(out, ref, atol=1e-4, rtol=1e-4), "mismatch vs reference"
    print("KERNEL_OK")
</pallas_src>

<mosaic_0001>
module attributes {stable_mosaic.version = 11 : i64} {
  func.func @word_sequence_kernel(%arg0: i32, %arg1: memref<16x32xf32, #tpu.memory_space<vmem>>, %arg2: memref<256x32xf32, #tpu.memory_space<vmem>>, %arg3: memref<8x32xf32, #tpu.memory_space<vmem>>, %arg4: memref<16x16xf32, #tpu.memory_space<vmem>>) attributes {dimension_semantics = [#tpu.dimension_semantics<parallel>], iteration_bounds = array<i64: 2>, scalar_prefetch = 0 : i64, scratch_operands = 0 : i64, tpu.core_type = #tpu.core_type<tc>, window_params = [{transform_indices = @transform_0, window_bounds = array<i64: 16, 32>}, {pipeline_mode = #tpu.pipeline_mode<synchronous>, transform_indices = @transform_1, window_bounds = array<i64: 256, 32>}, {pipeline_mode = #tpu.pipeline_mode<synchronous>, transform_indices = @transform_2, window_bounds = array<i64: 8, 32>}, {transform_indices = @transform_3, window_bounds = array<i64: 16, 16>}]} {
    %c0 = arith.constant 0 : index
    %c0_0 = arith.constant 0 : index
    %0 = vector.load %arg1[%c0, %c0_0] : memref<16x32xf32, #tpu.memory_space<vmem>>, vector<16x32xf32>
    %c0_1 = arith.constant 0 : index
    %c0_2 = arith.constant 0 : index
    %1 = vector.load %arg2[%c0_1, %c0_2] : memref<256x32xf32, #tpu.memory_space<vmem>>, vector<32x32xf32>
    %c0_3 = arith.constant 0 : index
    %c0_4 = arith.constant 0 : index
    %2 = vector.load %arg3[%c0_3, %c0_4] : memref<8x32xf32, #tpu.memory_space<vmem>>, vector<1x32xf32>
    %cst = arith.constant dense<0.000000e+00> : vector<16x32xf32>
    %3 = tpu.matmul %0, %1, %cst {dimension_numbers = #tpu.dot_dimension_numbers<[1], [0], [0], [1], [0, 0, 1, 1], [], []>} : vector<16x32xf32>, vector<32x32xf32>, vector<16x32xf32> -> vector<16x32xf32>
    %4 = vector.broadcast %2 : vector<1x32xf32> to vector<16x32xf32>
    %5 = arith.addf %3, %4 : vector<16x32xf32>
    %6 = math.tanh %5 : vector<16x32xf32>
    %7 = tpu.iota {dimensions = array<i32: 0>} : vector<16x32xi32>
    %c8_i32 = arith.constant 8 : i32
    %c0_i32 = arith.constant 0 : i32
    %8 = arith.cmpi eq, %c8_i32, %c0_i32 : i32
    %c1_i32 = arith.constant 1 : i32
    %9 = arith.select %8, %c1_i32, %c8_i32 : i32
    %10 = vector.broadcast %9 : i32 to vector<16x32xi32>
    %11 = arith.remsi %7, %10 : vector<16x32xi32>
    %c0_i32_5 = arith.constant 0 : i32
    %12 = vector.broadcast %c0_i32_5 : i32 to vector<16x32xi32>
    %13 = arith.cmpi ne, %11, %12 : vector<16x32xi32>
    %c0_i32_6 = arith.constant 0 : i32
    %14 = vector.broadcast %c0_i32_6 : i32 to vector<16x32xi32>
    %15 = arith.cmpi slt, %11, %14 : vector<16x32xi32>
    %c0_i32_7 = arith.constant 0 : i32
    %16 = arith.cmpi slt, %9, %c0_i32_7 : i32
    %17 = vector.broadcast %16 : i1 to vector<16x32xi1>
    %18 = vector.broadcast %17 : vector<16x32xi1> to vector<16x32xi1>
    %19 = arith.xori %15, %18 : vector<16x32xi1>
    %20 = arith.andi %19, %13 : vector<16x32xi1>
    %21 = vector.broadcast %9 : i32 to vector<16x32xi32>
    %22 = arith.addi %11, %21 : vector<16x32xi32>
    %23 = arith.select %20, %22, %11 : vector<16x32xi1>, vector<16x32xi32>
    %c0_i32_8 = arith.constant 0 : i32
    %24 = vector.broadcast %c0_i32_8 : i32 to vector<16x32xi32>
    %25 = arith.cmpi ne, %23, %24 : vector<16x32xi32>
    %26 = arith.extui %25 : vector<16x32xi1> to vector<16x32xi32>
    %27 = arith.sitofp %26 : vector<16x32xi32> to vector<16x32xf32>
    %c8_i32_9 = arith.constant 8 : i32
    %c0_i32_10 = arith.constant 0 : i32
    %28 = arith.cmpi eq, %c8_i32_9, %c0_i32_10 : i32
    %c1_i32_11 = arith.constant 1 : i32
    %29 = arith.select %28, %c1_i32_11, %c8_i32_9 : i32
    %30 = vector.broadcast %29 : i32 to vector<16x32xi32>
    %31 = arith.remsi %7, %30 : vector<16x32xi32>
    %c0_i32_12 = arith.constant 0 : i32
    %32 = vector.broadcast %c0_i32_12 : i32 to vector<16x32xi32>
    %33 = arith.cmpi ne, %31, %32 : vector<16x32xi32>
    %c0_i32_13 = arith.constant 0 : i32
    %34 = vector.broadcast %c0_i32_13 : i32 to vector<16x32xi32>
    %35 = arith.cmpi slt, %31, %34 : vector<16x32xi32>
    %c0_i32_14 = arith.constant 0 : i32
    %36 = arith.cmpi slt, %29, %c0_i32_14 : i32
    %37 = vector.broadcast %36 : i1 to vector<16x32xi1>
    %38 = vector.broadcast %37 : vector<16x32xi1> to vector<16x32xi1>
    %39 = arith.xori %35, %38 : vector<16x32xi1>
    %40 = arith.andi %39, %33 : vector<16x32xi1>
    %41 = vector.broadcast %29 : i32 to vector<16x32xi32>
    %42 = arith.addi %31, %41 : vector<16x32xi32>
    %43 = arith.select %40, %42, %31 : vector<16x32xi1>, vector<16x32xi32>
    %c7_i32 = arith.constant 7 : i32
    %44 = vector.broadcast %c7_i32 : i32 to vector<16x32xi32>
    %45 = arith.cmpi ne, %43, %44 : vector<16x32xi32>
    %46 = arith.extui %45 : vector<16x32xi1> to vector<16x32xi32>
    %47 = arith.sitofp %46 : vector<16x32xi32> to vector<16x32xf32>
    %c32 = arith.constant 32 : index
    %c0_15 = arith.constant 0 : index
    %48 = vector.load %arg2[%c32, %c0_15] : memref<256x32xf32, #tpu.memory_space<vmem>>, vector<32x32xf32>
    %c64 = arith.constant 64 : index
    %c0_16 = arith.constant 0 : index
    %49 = vector.load %arg2[%c64, %c0_16] : memref<256x32xf32, #tpu.memory_space<vmem>>, vector<32x32xf32>
    %c96 = arith.constant 96 : index
    %c0_17 = arith.constant 0 : index
    %50 = vector.load %arg2[%c96, %c0_17] : memref<256x32xf32, #tpu.memory_space<vmem>>, vector<32x32xf32>
    %c1 = arith.constant 1 : index
    %c0_18 = arith.constant 0 : index
    %51 = vector.load %arg3[%c1, %c0_18] : memref<8x32xf32, #tpu.memory_space<vmem>>, vector<1x32xf32>
    %c1_i32_19 = arith.constant 1 : i32
    %52 = tpu.dynamic_rotate %6 by %c1_i32_19 dim 0 : vector<16x32xf32>, i32 -> vector<16x32xf32>
    %53 = arith.mulf %27, %52 : vector<16x32xf32>
    %c15_i32 = arith.constant 15 : i32
    %54 = tpu.dynamic_rotate %6 by %c15_i32 dim 0 : vector<16x32xf32>, i32 -> vector<16x32xf32>
    %55 = arith.mulf %47, %54 : vector<16x32xf32>
    %cst_20 = arith.constant dense<0.000000e+00> : vector<16x32xf32>
    %56 = tpu.matmul %6, %49, %cst_20 {dimension_numbers = #tpu.dot_dimension_numbers<[1], [0], [0], [1], [0, 0, 1, 1], [], []>} : vector<16x32xf32>, vector<32x32xf32>, vector<16x32xf32> -> vector<16x32xf32>
    %cst_21 = arith.constant dense<0.000000e+00> : vector<16x32xf32>
    %57 = tpu.matmul %53, %48, %cst_21 {dimension_numbers = #tpu.dot_dimension_numbers<[1], [0], [0], [1], [0, 0, 1, 1], [], []>} : vector<16x32xf32>, vector<32x32xf32>, vector<16x32xf32> -> vector<16x32xf32>
    %58 = arith.addf %56, %57 : vector<16x32xf32>
    %cst_22 = arith.constant dense<0.000000e+00> : vector<16x32xf32>
    %59 = tpu.matmul %55, %50, %cst_22 {dimension_numbers = #tpu.dot_dimension_numbers<[1], [0], [0], [1], [0, 0, 1, 1], [], []>} : vector<16x32xf32>, vector<32x32xf32>, vector<16x32xf32> -> vector<16x32xf32>
    %60 = arith.addf %58, %59 : vector<16x32xf32>
    %61 = vector.broadcast %51 : vector<1x32xf32> to vector<16x32xf32>
    %62 = arith.addf %60, %61 : vector<16x32xf32>
    %cst_23 = arith.constant 0.000000e+00 : f32
    %63 = vector.broadcast %cst_23 : f32 to vector<16x32xf32>
    %64 = arith.maximumf %62, %63 : vector<16x32xf32>
    %c3 = arith.constant 3 : index
    %c0_24 = arith.constant 0 : index
    %65 = vector.load %arg3[%c3, %c0_24] : memref<8x32xf32, #tpu.memory_space<vmem>>, vector<1x32xf32>
    %c5 = arith.constant 5 : index
    %c0_25 = arith.constant 0 : index
    %66 = vector.load %arg3[%c5, %c0_25] : memref<8x32xf32, #tpu.memory_space<vmem>>, vector<1x32xf32>
    %67 = vector.broadcast %65 : vector<1x32xf32> to vector<16x32xf32>
    %68 = arith.mulf %64, %67 : vector<16x32xf32>
    %69 = vector.broadcast %66 : vector<1x32xf32> to vector<16x32xf32>
    %70 = arith.addf %68, %69 : vector<16x32xf32>
    %c128 = arith.constant 128 : index
    %c0_26 = arith.constant 0 : index
    %71 = vector.load %arg2[%c128, %c0_26] : memref<256x32xf32, #tpu.memory_space<vmem>>, vector<32x32xf32>
    %c160 = arith.constant 160 : index
    %c0_27 = arith.constant 0 : index
    %72 = vector.load %arg2[%c160, %c0_27] : memref<256x32xf32, #tpu.memory_space<vmem>>, vector<32x32xf32>
    %c192 = arith.constant 192 : index
    %c0_28 = arith.constant 0 : index
    %73 = vector.load %arg2[%c192, %c0_28] : memref<256x32xf32, #tpu.memory_space<vmem>>, vector<32x32xf32>
    %c2 = arith.constant 2 : index
    %c0_29 = arith.constant 0 : index
    %74 = vector.load %arg3[%c2, %c0_29] : memref<8x32xf32, #tpu.memory_space<vmem>>, vector<1x32xf32>
    %c1_i32_30 = arith.constant 1 : i32
    %75 = tpu.dynamic_rotate %70 by %c1_i32_30 dim 0 : vector<16x32xf32>, i32 -> vector<16x32xf32>
    %76 = arith.mulf %27, %75 : vector<16x32xf32>
    %c15_i32_31 = arith.constant 15 : i32
    %77 = tpu.dynamic_rotate %70 by %c15_i32_31 dim 0 : vector<16x32xf32>, i32 -> vector<16x32xf32>
    %78 = arith.mulf %47, %77 : vector<16x32xf32>
    %cst_32 = arith.constant dense<0.000000e+00> : vector<16x32xf32>
    %79 = tpu.matmul %70, %72, %cst_32 {dimension_numbers = #tpu.dot_dimension_numbers<[1], [0], [0], [1], [0, 0, 1, 1], [], []>} : vector<16x32xf32>, vector<32x32xf32>, vector<16x32xf32> -> vector<16x32xf32>
    %cst_33 = arith.constant dense<0.000000e+00> : vector<16x32xf32>
    %80 = tpu.matmul %76, %71, %cst_33 {dimension_numbers = #tpu.dot_dimension_numbers<[1], [0], [0], [1], [0, 0, 1, 1], [], []>} : vector<16x32xf32>, vector<32x32xf32>, vector<16x32xf32> -> vector<16x32xf32>
    %81 = arith.addf %79, %80 : vector<16x32xf32>
    %cst_34 = arith.constant dense<0.000000e+00> : vector<16x32xf32>
    %82 = tpu.matmul %78, %73, %cst_34 {dimension_numbers = #tpu.dot_dimension_numbers<[1], [0], [0], [1], [0, 0, 1, 1], [], []>} : vector<16x32xf32>, vector<32x32xf32>, vector<16x32xf32> -> vector<16x32xf32>
    %83 = arith.addf %81, %82 : vector<16x32xf32>
    %84 = vector.broadcast %74 : vector<1x32xf32> to vector<16x32xf32>
    %85 = arith.addf %83, %84 : vector<16x32xf32>
    %cst_35 = arith.constant 0.000000e+00 : f32
    %86 = vector.broadcast %cst_35 : f32 to vector<16x32xf32>
    %87 = arith.maximumf %85, %86 : vector<16x32xf32>
    %c224 = arith.constant 224 : index
    %c0_36 = arith.constant 0 : index
    %88 = vector.load %arg2[%c224, %c0_36] : memref<256x32xf32, #tpu.memory_space<vmem>>, vector<32x32xf32>
    %89 = vector.extract_strided_slice %88 {offsets = [0, 0], sizes = [32, 16], strides = [1, 1]} : vector<32x32xf32> to vector<32x16xf32>
    %c7 = arith.constant 7 : index
    %c0_37 = arith.constant 0 : index
    %90 = vector.load %arg3[%c7, %c0_37] : memref<8x32xf32, #tpu.memory_space<vmem>>, vector<1x32xf32>
    %91 = vector.extract_strided_slice %90 {offsets = [0, 0], sizes = [1, 16], strides = [1, 1]} : vector<1x32xf32> to vector<1x16xf32>
    %cst_38 = arith.constant dense<0.000000e+00> : vector<16x16xf32>
    %92 = tpu.matmul %87, %89, %cst_38 {dimension_numbers = #tpu.dot_dimension_numbers<[1], [0], [0], [1], [0, 0, 1, 1], [], []>} : vector<16x32xf32>, vector<32x16xf32>, vector<16x16xf32> -> vector<16x16xf32>
    %93 = vector.broadcast %91 : vector<1x16xf32> to vector<16x16xf32>
    %94 = arith.addf %92, %93 : vector<16x16xf32>
    %c0_39 = arith.constant 0 : index
    %c0_40 = arith.constant 0 : index
    %95 = vector.load %arg4[%c0_39, %c0_40] : memref<16x16xf32, #tpu.memory_space<vmem>>, vector<16x16xf32>
    tpu.vector_store %arg4[%c0_39, %c0_40], %94 {strides = array<i32>} : memref<16x16xf32, #tpu.memory_space<vmem>>, vector<16x16xf32>,
    return
  }
  func.func @transform_0(%arg0: i32) -> (i32, i32) {
    %c0_i32 = arith.constant 0 : i32
    %c0_i32_0 = arith.constant 0 : i32
    return %arg0, %c0_i32 : i32, i32
  }
  func.func @transform_1(%arg0: i32) -> (i32, i32) {
    %c0_i32 = arith.constant 0 : i32
    %c0_i32_0 = arith.constant 0 : i32
    %c0_i32_1 = arith.constant 0 : i32
    return %c0_i32, %c0_i32_0 : i32, i32
  }
  func.func @transform_2(%arg0: i32) -> (i32, i32) {
    %c0_i32 = arith.constant 0 : i32
    %c0_i32_0 = arith.constant 0 : i32
    %c0_i32_1 = arith.constant 0 : i32
    return %c0_i32, %c0_i32_0 : i32, i32
  }
  func.func @transform_3(%arg0: i32) -> (i32, i32) {
    %c0_i32 = arith.constant 0 : i32
    %c0_i32_0 = arith.constant 0 : i32
    return %arg0, %c0_i32 : i32, i32
  }
}

</mosaic_0001>

<llo_original>
// kernel: tpu_custom_call.1
$region0: #{tpu_custom_call.1}
  #allocation0 [shape = 'u32[]', space=smem, size = 0x4, offset = 0x4, fixed_abs, tag = 'smem constant byte address 0x4 - core index']
  #allocation1 [shape = 'u32[144,128]{1,0:T(1,128)}', space=vmem, size = 0x12000, scoped, tag = 'internal scratch']
  %s0 = inlined_call_operand.vmem [shape: f32[32,32], index: 0, kind: input, shape index: {}]
  %s1 = inlined_call_operand.vmem [shape: f32[256,32], index: 1, kind: input, shape index: {}]
  %s2 = inlined_call_operand.vmem [shape: f32[8,32], index: 2, kind: input, shape index: {}]
  %s3 = inlined_call_operand.vmem [shape: f32[32,16], index: 3, kind: output, shape index: {}]
  %s4 = sld [smem:[#allocation0]]
  $region45: #{tpu_custom_call.1} parent=0
    _
  %s6 = ssub.s32 1, %s4
  %s7 = scalar_select 0, %s6, %s4
  loop: start=0, step=1, limit=4
  $region2: #{tpu_custom_call.1} parent=0 // loop_pre_header
    _
  $region3: #{tpu_custom_call.1} parent=0 // loop_header
    %s9 = sphi 0, %s13
    %p10 = scmp.ge.s32.totalorder %s9, 4
    %s19 = sphi 0, %s21
    %s22 = sphi 0, %s19
    %s23 = sphi 0, %s22
    %s39 = sphi 0, %s23
    %s43 = sphi 0, %s43
    %s45 = sphi 0, %s43
    %s46 = sphi 0, %s45
    %s60 = sphi 0, %s46
    %s64 = sphi 0, %s64
    %s66 = sphi 0, %s64
    %s67 = sphi 0, %s66
    %s81 = sphi 0, %s67
    %s87 = sphi 0, %s89
    %s90 = sphi 0, %s87
    %s91 = sphi 0, %s90
    %s107 = sphi 0, %s91
  $region4: #{tpu_custom_call.1} parent=0 // loop_header_branch
    %12 = sbr.rel (%p10) target = $region8
  $region5: #{tpu_custom_call.1} parent=0 // loop_body
    %s14 = ssub.s32 %s9, 1
    %s15 = ssub.s32 %s9, 2
    %s16 = sadd.s32 %s9, 1
    %s17 = ssub.s32 %s9, %s16
    %p18 = scmp.eq.s32.totalorder %s17, 0
    %s20 = sadd.s32 %s19, 1
    %s21 = scalar_select %p18, %s19, %s20
    %p24 = pneg %p18
    %p25 = scmp.eq.s32.totalorder %s9, 1
    %p26 = por %p24, %p25
    %p27 = scmp.ne.s32.totalorder %s19, %s22
    %p28 = scmp.eq.s32.totalorder %s9, 0
    %p29 = por %p27, %p28
    %p30 = scmp.ne.s32.totalorder %s19, %s22
    %p31 = scmp.eq.s32.totalorder %s14, 1
    %p32 = por %p30, %p31
    %p33 = scmp.ne.s32.totalorder %s22, %s23
    %p34 = scmp.eq.s32.totalorder %s14, 0
    %p35 = por %p33, %p34
    %p36 = scmp.ne.s32.totalorder %s22, %s23
    %p37 = scmp.eq.s32.totalorder %s15, 1
    %p38 = por %p36, %p37
    %p40 = scmp.ne.s32.totalorder %s23, %s39
    %p41 = scmp.eq.s32.totalorder %s15, 0
    %p42 = por %p40, %p41
    %s44 = sadd.s32 %s43, 1
    %p47 = scmp.eq.s32.totalorder %s9, 1
    %p48 = scmp.ne.s32.totalorder %s43, %s45
    %p49 = scmp.eq.s32.totalorder %s9, 0
    %p50 = por %p48, %p49
    %p51 = scmp.ne.s32.totalorder %s43, %s45
    %p52 = scmp.eq.s32.totalorder %s14, 1
    %p53 = por %p51, %p52
    %p54 = scmp.ne.s32.totalorder %s45, %s46
    %p55 = scmp.eq.s32.totalorder %s14, 0
    %p56 = por %p54, %p55
    %p57 = scmp.ne.s32.totalorder %s45, %s46
    %p58 = scmp.eq.s32.totalorder %s15, 1
    %p59 = por %p57, %p58
    %p61 = scmp.ne.s32.totalorder %s46, %s60
    %p62 = scmp.eq.s32.totalorder %s15, 0
    %p63 = por %p61, %p62
    %s65 = sadd.s32 %s64, 1
    %p68 = scmp.eq.s32.totalorder %s9, 1
    %p69 = scmp.ne.s32.totalorder %s64, %s66
    %p70 = scmp.eq.s32.totalorder %s9, 0
    %p71 = por %p69, %p70
    %p72 = scmp.ne.s32.totalorder %s64, %s66
    %p73 = scmp.eq.s32.totalorder %s14, 1
    %p74 = por %p72, %p73
    %p75 = scmp.ne.s32.totalorder %s66, %s67
    %p76 = scmp.eq.s32.totalorder %s14, 0
    %p77 = por %p75, %p76
    %p78 = scmp.ne.s32.totalorder %s66, %s67
    %p79 = scmp.eq.s32.totalorder %s15, 1
    %p80 = por %p78, %p79
    %p82 = scmp.ne.s32.totalorder %s67, %s81
    %p83 = scmp.eq.s32.totalorder %s15, 0
    %p84 = por %p82, %p83
    %s85 = ssub.s32 %s9, %s16
    %p86 = scmp.eq.s32.totalorder %s85, 0
    %s88 = sadd.s32 %s87, 1
    %s89 = scalar_select %p86, %s87, %s88
    %p92 = pneg %p86
    %p93 = scmp.eq.s32.totalorder %s9, 1
    %p94 = por %p92, %p93
    %p95 = scmp.ne.s32.totalorder %s87, %s90
    %p96 = scmp.eq.s32.totalorder %s9, 0
    %p97 = por %p95, %p96
    %p98 = scmp.ne.s32.totalorder %s87, %s90
    %p99 = scmp.eq.s32.totalorder %s14, 1
    %p100 = por %p98, %p99
    %p101 = scmp.ne.s32.totalorder %s90, %s91
    %p102 = scmp.eq.s32.totalorder %s14, 0
    %p103 = por %p101, %p102
    %p104 = scmp.ne.s32.totalorder %s90, %s91
    %p105 = scmp.eq.s32.totalorder %s15, 1
    %p106 = por %p104, %p105
    %p108 = scmp.ne.s32.totalorder %s91, %s107
    %p109 = scmp.eq.s32.totalorder %s15, 0
    %p110 = por %p108, %p109
    %p111 = scmp.le.s32.totalorder 1, %s9
    %p112 = scmp.lt.s32.totalorder %s9, 3
    %p113 = pnand %p111, %p112
    %p114 = pneg %p113
    // Predicated region
    $region9: #{tpu_custom_call.1} parent=5 // pred_check
      _
    $region10: #{tpu_custom_call.1} parent=5 // pred_check_branch
      %116 = sbr.rel (%p113) target = $region12
    $region11: #{tpu_custom_call.1} parent=5 // pred_region
      %s117 = ssub.s32 %s9, 1
      // Predicated region
      $region13: #{tpu_custom_call.1} parent=11 // pred_check
        %p118 = pneg %p56
      $region14: #{tpu_custom_call.1} parent=11 // pred_check_branch
        %120 = sbr.rel (%p118) target = $region16
      $region15: #{tpu_custom_call.1} parent=11 // pred_region
        _
      $region16: #{tpu_custom_call.1} parent=11 // pred_fallthru
        _
      // Predicated region
      $region17: #{tpu_custom_call.1} parent=11 // pred_check
        %p121 = pneg %p77
      $region18: #{tpu_custom_call.1} parent=11 // pred_check_branch
        %123 = sbr.rel (%p121) target = $region20
      $region19: #{tpu_custom_call.1} parent=11 // pred_region
        _
      $region20: #{tpu_custom_call.1} parent=11 // pred_fallthru
        _
    $region12: #{tpu_custom_call.1} parent=5 // pred_fallthru
      _
    %p124 = scmp.lt.s32.totalorder %s9, 2
    // Predicated region
    $region21: #{tpu_custom_call.1} parent=5 // pred_check
      %p125 = pneg %p124
    $region22: #{tpu_custom_call.1} parent=5 // pred_check_branch
      %127 = sbr.rel (%p125) target = $region24
    $region23: #{tpu_custom_call.1} parent=5 // pred_region
      // Predicated region
      $region25: #{tpu_custom_call.1} parent=23 // pred_check
        %p128 = pneg %p29
      $region26: #{tpu_custom_call.1} parent=23 // pred_check_branch
        %130 = sbr.rel (%p128) target = $region28
      $region27: #{tpu_custom_call.1} parent=23 // pred_region
        %s131 = smul.u32 2, %s9
        %p132 = scmp.lt.s32.totalorder %s131, 3
        %s133 = scalar_select %p132, %s131, 3
        %s134 = smul.addr %s133, 8
        %s135 = scalar_lea.vmem %s0, %s134
        %s136 = smul.u32 2, %s9
      $region28: #{tpu_custom_call.1} parent=23 // pred_fallthru
        _
    $region24: #{tpu_custom_call.1} parent=5 // pred_fallthru
      _
    %p137 = scmp.le.s32.totalorder 1, %s9
    %p138 = scmp.lt.s32.totalorder %s9, 3
    %p139 = pnand %p137, %p138
    %p140 = pneg %p139
    // Predicated region
    $region29: #{tpu_custom_call.1} parent=5 // pred_check
      _
    $region30: #{tpu_custom_call.1} parent=5 // pred_check_branch
      %142 = sbr.rel (%p139) target = $region32
    $region31: #{tpu_custom_call.1} parent=5 // pred_region
      %s143 = ssub.s32 %s9, 1
      %s144 = smul.u32 2, %s14
      %p145 = scmp.lt.s32.totalorder %s144, 3
      %s146 = scalar_select %p145, %s144, 3
      %s147 = smul.addr %s146, 8
      %s148 = scalar_lea.vmem %s0, %s147
      %p149 = pneg %p35
      %p150 = pneg %p32
      %p151 = pneg %p56
      %p152 = pneg %p53
      %p153 = pneg %p77
      %p154 = pneg %p74
      %p155 = pneg %p103
      %p156 = pneg %p100
      %s157 = smul.u32 2, %s14
      %p158 = scmp.lt.s32.totalorder %s157, 3
      %s159 = scalar_select %p158, %s157, 3
      %s160 = smul.addr %s159, 8
      %s161 = scalar_lea.vmem %s3, %s160
      %s162 = smul.u32 2, %s14
      %p163 = scmp.lt.s32.totalorder %s162, 3
      %s164 = scalar_select %p163, %s162, 3
      %s165 = smul.addr %s164, 8
      %s166 = scalar_lea.vmem %s0, %s165
      %s167 = smul.u32 2, %s14
      %s168 = smul.u32 2, %s14
      %p169 = scmp.lt.s32.totalorder %s168, 3
      %s170 = scalar_select %p169, %s168, 3
      %s171 = smul.addr %s170, 8
      %s172 = scalar_lea.vmem %s3, %s171
      %s173 = smul.u32 2, %s14
      %v174 = vld [vmem:[%s166] sm:$0xff]
      %v175 = vld [vmem:[%s166 + $0x8] sm:$0xff]
      %v176 = vld [vmem:[%s1] sm:$0xff]
      %v177 = vld [vmem:[%s1 + $0x8] sm:$0xff]
      %v178 = vld [vmem:[%s1 + $0x10] sm:$0xff]
      %v179 = vld [vmem:[%s1 + $0x18] sm:$0xff]
      %v180 = vld [vmem:[%s2] sm:$0x1]
      %v181 = vlaneseq
      %v182 = vshrl.u32 %v181, 7
      %v183 = vsub.s32 0, %v182
      %v184 = vrot.slane %v180, %v183
      %vm185 = vcmask 261120
      %v187 = vsel %vm185, %v174, 0
      %v190 = vsel %vm185, %v175, 0
      %192 = vmatprep.subr.mxu0 0.0
      %193 = vmatpush1.msra.mxu0 %v176
      %194 = vmatprep.subr.mxu0 0.0
      %195 = vmatpush1.msra.mxu0 %v177
      %196 = vmatprep.subr.mxu0 0.0
      %197 = vmatpush1.msra.mxu0 %v178
      %198 = vmatprep.subr.mxu0 0.0
      %199 = vmatpush1.msra.mxu0 %v179
      %200 = vmatprep.subr.mxu0 0.0
      %201 = vmatpush1.msra.mxu0 0.0
      %202 = vmatprep.subr.mxu0 0.0
      %203 = vmatpush1.msra.mxu0 0.0
      %204 = vmatprep.subr.mxu0 0.0
      %205 = vmatpush1.msra.mxu0 0.0
      %206 = vmatprep.subr.mxu0 0.0
      %207 = vmatpush1.msra.mxu0 0.0
      %208 = vmatprep.subr.mxu0 0.0
      %209 = vmatpush1.msra.mxu0 0.0
      %210 = vmatprep.subr.mxu0 0.0
      %211 = vmatpush1.msra.mxu0 0.0
      %212 = vmatprep.subr.mxu0 0.0
      %213 = vmatpush1.msra.mxu0 0.0
      %214 = vmatprep.subr.mxu0 0.0
      %215 = vmatpush1.msra.mxu0 0.0
      %216 = vmatprep.subr.mxu0 0.0
      %217 = vmatpush1.msra.mxu0 0.0
      %218 = vmatprep.subr.mxu0 0.0
      %219 = vmatpush1.msra.mxu0 0.0
      %220 = vmatprep.subr.mxu0 0.0
      %221 = vmatpush1.msra.mxu0 0.0
      %222 = vmatprep.subr.mxu0 0.0
      %223 = vmatpush1.msra.mxu0 0.0
      %224 = vmatprep.subr.mxu0 0.0
      %225 = vmatpush1.msra.mxu0 0.0
      %226 = vmatprep.subr.mxu0 0.0
      %227 = vmatpush1.msra.mxu0 0.0
      %228 = vmatprep.subr.mxu0 0.0
      %229 = vmatpush1.msra.mxu0 0.0
      %230 = vmatprep.subr.mxu0 0.0
      %231 = vmatpush1.msra.mxu0 0.0
      %232 = vmatprep.subr.mxu0 0.0
      %233 = vmatpush1.msra.mxu0 0.0
      %234 = vmatprep.subr.mxu0 0.0
      %235 = vmatpush1.msra.mxu0 0.0
      %236 = vmatprep.subr.mxu0 0.0
      %237 = vmatpush1.msra.mxu0 0.0
      %238 = vmatprep.subr.mxu0 0.0
      %239 = vmatpush1.msra.mxu0 0.0
      %240 = vmatprep.subr.mxu0 0.0
      %241 = vmatpush1.msra.mxu0 0.0
      %242 = vmatprep.subr.mxu0 0.0
      %243 = vmatpush1.msra.mxu0 0.0
      %244 = vmatprep.subr.mxu0 0.0
      %245 = vmatpush1.msra.mxu0 0.0
      %246 = vmatprep.subr.mxu0 0.0
      %247 = vmatpush1.msra.mxu0 0.0
      %248 = vmatprep.subr.mxu0 0.0
      %249 = vmatpush1.msra.mxu0 0.0
      %250 = vmatprep.subr.mxu0 0.0
      %251 = vmatpush1.msra.mxu0 0.0
      %252 = vmatprep.subr.mxu0 0.0
      %253 = vmatpush1.msra.mxu0 0.0
      %254 = vmatprep.subr.mxu0 0.0
      %255 = vmatpush1.msra.mxu0 0.0
      %256 = vmatprep.mubr.f32.mxu0 0.0
      %257 = vmatmul.mubr.f32.gmra.mrb[0].mxu0 %v187
      %v258 = vpop.f32.mrb[0].mxu0
      %v259 = vadd.f32 %v184, %v258
      %v260 = vpop.f32.mrb[0].mxu0
      %261 = vmatprep.mubr.f32.mxu0 0.0
      %262 = vmatmul.mubr.f32.gmra.mrb[0].mxu0 %v190
      %v263 = vpop.f32.mrb[0].mxu0
      %v264 = vadd.f32 %v184, %v263
      %v265 = vpop.f32.mrb[0].mxu0
      %266 = vdwg.mxu0
      %v267 = vtanh.pop %v259
      %v268 = vtanh.pop %v264
      %v269 = vlaneseq
      %v270 = vshrl.u32 %v269, 7
      %v271 = vadd.s32 %v270, 8
      %vm272 = vcmp.lt.s32.totalorder %v270, 0
      %v273 = vsub.s32 0, %v270
      %v274 = vsel %vm272, %v273, %v270
      %v275 = vshrl.u32 %v274, 3
      %v276 = vand.u32 %v274, 7
      %v277 = vsub.s32 0, %v276
      %v278 = vsel %vm272, %v277, %v276
      %vm279 = vcmp.lt.s32.totalorder %v271, 0
      %v280 = vsub.s32 0, %v271
      %v281 = vsel %vm279, %v280, %v271
      %v282 = vshrl.u32 %v281, 3
      %v283 = vand.u32 %v281, 7
      %v284 = vsub.s32 0, %v283
      %v285 = vsel %vm279, %v284, %v283
      %vm286 = vcmp.ne.s32.totalorder %v278, 0
      %vm287 = vcmp.ne.s32.totalorder %v285, 0
      %vm288 = vcmp.lt.s32.totalorder %v278, 0
      %vm289 = vcmp.lt.s32.totalorder %v285, 0
      %vm290 = vmand %vm288, %vm286
      %vm291 = vmand %vm289, %vm287
      %v292 = vadd.s32 %v278, 8
      %v293 = vadd.s32 %v285, 8
      %v294 = vsel %vm290, %v292, %v278
      %v295 = vsel %vm291, %v293, %v285
      %vm296 = vcmp.ne.s32.totalorder %v294, 0
      %vm297 = vcmp.ne.s32.totalorder %v295, 0
      %v298 = vsel %vm296, 1, 0
      %v299 = vsel %vm297, 1, 0
      %v300 = vcvt.s32.f32 %v298
      %v301 = vcvt.s32.f32 %v299
      %vm302 = vcmp.ne.s32.totalorder %v294, 7
      %vm303 = vcmp.ne.s32.totalorder %v295, 7
      %v304 = vsel %vm302, 1, 0
      %v305 = vsel %vm303, 1, 0
      %v306 = vcvt.s32.f32 %v304
      %v307 = vcvt.s32.f32 %v305
      %v308 = vld [vmem:[%s1 + $0x20] sm:$0xff]
      %v309 = vld [vmem:[%s1 + $0x28] sm:$0xff]
      %v310 = vld [vmem:[%s1 + $0x30] sm:$0xff]
      %v311 = vld [vmem:[%s1 + $0x38] sm:$0xff]
      %v312 = vld [vmem:[%s1 + $0x40] sm:$0xff]
      %v313 = vld [vmem:[%s1 + $0x48] sm:$0xff]
      %v314 = vld [vmem:[%s1 + $0x50] sm:$0xff]
      %v315 = vld [vmem:[%s1 + $0x58] sm:$0xff]
      %v316 = vld [vmem:[%s1 + $0x60] sm:$0xff]
      %v317 = vld [vmem:[%s1 + $0x68] sm:$0xff]
      %v318 = vld [vmem:[%s1 + $0x70] sm:$0xff]
      %v319 = vld [vmem:[%s1 + $0x78] sm:$0xff]
      %v320 = vld [vmem:[%s2 + $0x1] sm:$0x1]
      %v321 = vrot.slane %v267, 7
      %v322 = vrot.slane %v268, 7
      %vm323 = vcmp.lt.s32.totalorder %v270, 1
      %v324 = vsel %vm323, %v321, %v322
      %v325 = vsel %vm323, %v322, %v321
      %v326 = vmul.f32 %v300, %v325
      %v327 = vmul.f32 %v301, %v324
      %v328 = vrot.slane %v267, 1
      %v329 = vrot.slane %v268, 1
      %vm330 = vcmp.lt.s32.totalorder %v270, 7
      %v331 = vsel %vm330, %v328, %v329
      %v332 = vsel %vm330, %v329, %v328
      %v333 = vmul.f32 %v306, %v331
      %v334 = vmul.f32 %v307, %v332
      %v336 = vsel %vm185, %v326, 0
      %v339 = vsel %vm185, %v327, 0
      %341 = vmatprep.subr.mxu0 0.0
      %342 = vmatpush1.msra.mxu0 %v308
      %343 = vmatprep.subr.mxu0 0.0
      %344 = vmatpush1.msra.mxu0 %v309
      %345 = vmatprep.subr.mxu0 0.0
      %346 = vmatpush1.msra.mxu0 %v310
      %347 = vmatprep.subr.mxu0 0.0
      %348 = vmatpush1.msra.mxu0 %v311
      %349 = vmatprep.subr.mxu0 0.0
      %350 = vmatpush1.msra.mxu0 0.0
      %351 = vmatprep.subr.mxu0 0.0
      %352 = vmatpush1.msra.mxu0 0.0
      %353 = vmatprep.subr.mxu0 0.0
      %354 = vmatpush1.msra.mxu0 0.0
      %355 = vmatprep.subr.mxu0 0.0
      %356 = vmatpush1.msra.mxu0 0.0
      %357 = vmatprep.subr.mxu0 0.0
      %358 = vmatpush1.msra.mxu0 0.0
      %359 = vmatprep.subr.mxu0 0.0
      %360 = vmatpush1.msra.mxu0 0.0
      %361 = vmatprep.subr.mxu0 0.0
      %362 = vmatpush1.msra.mxu0 0.0
      %363 = vmatprep.subr.mxu0 0.0
      %364 = vmatpush1.msra.mxu0 0.0
      %365 = vmatprep.subr.mxu0 0.0
      %366 = vmatpush1.msra.mxu0 0.0
      %367 = vmatprep.subr.mxu0 0.0
      %368 = vmatpush1.msra.mxu0 0.0
      %369 = vmatprep.subr.mxu0 0.0
      %370 = vmatpush1.msra.mxu0 0.0
      %371 = vmatprep.subr.mxu0 0.0
      %372 = vmatpush1.msra.mxu0 0.0
      %373 = vmatprep.subr.mxu0 0.0
      %374 = vmatpush1.msra.mxu0 0.0
      %375 = vmatprep.subr.mxu0 0.0
      %376 = vmatpush1.msra.mxu0 0.0
      %377 = vmatprep.subr.mxu0 0.0
      %378 = vmatpush1.msra.mxu0 0.0
      %379 = vmatprep.subr.mxu0 0.0
      %380 = vmatpush1.msra.mxu0 0.0
      %381 = vmatprep.subr.mxu0 0.0
      %382 = vmatpush1.msra.mxu0 0.0
      %383 = vmatprep.subr.mxu0 0.0
      %384 = vmatpush1.msra.mxu0 0.0
      %385 = vmatprep.subr.mxu0 0.0
      %386 = vmatpush1.msra.mxu0 0.0
      %387 = vmatprep.subr.mxu0 0.0
      %388 = vmatpush1.msra.mxu0 0.0
      %389 = vmatprep.subr.mxu0 0.0
      %390 = vmatpush1.msra.mxu0 0.0
      %391 = vmatprep.subr.mxu0 0.0
      %392 = vmatpush1.msra.mxu0 0.0
      %393 = vmatprep.subr.mxu0 0.0
      %394 = vmatpush1.msra.mxu0 0.0
      %395 = vmatprep.subr.mxu0 0.0
      %396 = vmatpush1.msra.mxu0 0.0
      %397 = vmatprep.subr.mxu0 0.0
      %398 = vmatpush1.msra.mxu0 0.0
      %399 = vmatprep.subr.mxu0 0.0
      %400 = vmatpush1.msra.mxu0 0.0
      %401 = vmatprep.subr.mxu0 0.0
      %402 = vmatpush1.msra.mxu0 0.0
      %403 = vmatprep.subr.mxu0 0.0
      %404 = vmatpush1.msra.mxu0 0.0
      %405 = vmatprep.mubr.f32.mxu0 0.0
      %406 = vmatmul.mubr.f32.gmra.mrb[0].mxu0 %v336
      %v407 = vpop.f32.mrb[0].mxu0
      %v408 = vadd.f32 0.0, %v407
      %v409 = vpop.f32.mrb[0].mxu0
      %410 = vmatprep.mubr.f32.mxu0 0.0
      %411 = vmatmul.mubr.f32.gmra.mrb[0].mxu0 %v339
      %v412 = vpop.f32.mrb[0].mxu0
      %v413 = vadd.f32 0.0, %v412
      %v414 = vpop.f32.mrb[0].mxu0
      %415 = vdwg.mxu0
      %v417 = vsel %vm185, %v267, 0
      %v420 = vsel %vm185, %v268, 0
      %422 = vmatprep.subr.mxu0 0.0
      %423 = vmatpush1.msra.mxu0 %v312
      %424 = vmatprep.subr.mxu0 0.0
      %425 = vmatpush1.msra.mxu0 %v313
      %426 = vmatprep.subr.mxu0 0.0
      %427 = vmatpush1.msra.mxu0 %v314
      %428 = vmatprep.subr.mxu0 0.0
      %429 = vmatpush1.msra.mxu0 %v315
      %430 = vmatprep.subr.mxu0 0.0
      %431 = vmatpush1.msra.mxu0 0.0
      %432 = vmatprep.subr.mxu0 0.0
      %433 = vmatpush1.msra.mxu0 0.0
      %434 = vmatprep.subr.mxu0 0.0
      %435 = vmatpush1.msra.mxu0 0.0
      %436 = vmatprep.subr.mxu0 0.0
      %437 = vmatpush1.msra.mxu0 0.0
      %438 = vmatprep.subr.mxu0 0.0
      %439 = vmatpush1.msra.mxu0 0.0
      %440 = vmatprep.subr.mxu0 0.0
      %441 = vmatpush1.msra.mxu0 0.0
      %442 = vmatprep.subr.mxu0 0.0
      %443 = vmatpush1.msra.mxu0 0.0
      %444 = vmatprep.subr.mxu0 0.0
      %445 = vmatpush1.msra.mxu0 0.0
      %446 = vmatprep.subr.mxu0 0.0
      %447 = vmatpush1.msra.mxu0 0.0
      %448 = vmatprep.subr.mxu0 0.0
      %449 = vmatpush1.msra.mxu0 0.0
      %450 = vmatprep.subr.mxu0 0.0
      %451 = vmatpush1.msra.mxu0 0.0
      %452 = vmatprep.subr.mxu0 0.0
      %453 = vmatpush1.msra.mxu0 0.0
      %454 = vmatprep.subr.mxu0 0.0
      %455 = vmatpush1.msra.mxu0 0.0
      %456 = vmatprep.subr.mxu0 0.0
      %457 = vmatpush1.msra.mxu0 0.0
      %458 = vmatprep.subr.mxu0 0.0
      %459 = vmatpush1.msra.mxu0 0.0
      %460 = vmatprep.subr.mxu0 0.0
      %461 = vmatpush1.msra.mxu0 0.0
      %462 = vmatprep.subr.mxu0 0.0
      %463 = vmatpush1.msra.mxu0 0.0
      %464 = vmatprep.subr.mxu0 0.0
      %465 = vmatpush1.msra.mxu0 0.0
      %466 = vmatprep.subr.mxu0 0.0
      %467 = vmatpush1.msra.mxu0 0.0
      %468 = vmatprep.subr.mxu0 0.0
      %469 = vmatpush1.msra.mxu0 0.0
      %470 = vmatprep.subr.mxu0 0.0
      %471 = vmatpush1.msra.mxu0 0.0
      %472 = vmatprep.subr.mxu0 0.0
      %473 = vmatpush1.msra.mxu0 0.0
      %474 = vmatprep.subr.mxu0 0.0
      %475 = vmatpush1.msra.mxu0 0.0
      %476 = vmatprep.subr.mxu0 0.0
      %477 = vmatpush1.msra.mxu0 0.0
      %478 = vmatprep.subr.mxu0 0.0
      %479 = vmatpush1.msra.mxu0 0.0
      %480 = vmatprep.subr.mxu0 0.0
      %481 = vmatpush1.msra.mxu0 0.0
      %482 = vmatprep.subr.mxu0 0.0
      %483 = vmatpush1.msra.mxu0 0.0
      %484 = vmatprep.subr.mxu0 0.0
      %485 = vmatpush1.msra.mxu0 0.0
      %486 = vmatprep.mubr.f32.mxu0 0.0
      %487 = vmatmul.mubr.f32.gmra.mrb[0].mxu0 %v417
      %v488 = vpop.f32.mrb[0].mxu0
      %v489 = vadd.f32 %v408, %v488
      %v490 = vpop.f32.mrb[0].mxu0
      %491 = vmatprep.mubr.f32.mxu0 0.0
      %492 = vmatmul.mubr.f32.gmra.mrb[0].mxu0 %v420
      %v493 = vpop.f32.mrb[0].mxu0
      %v494 = vadd.f32 %v413, %v493
      %v495 = vpop.f32.mrb[0].mxu0
      %496 = vdwg.mxu0
      %v498 = vsel %vm185, %v333, 0
      %v501 = vsel %vm185, %v334, 0
      %503 = vmatprep.subr.mxu0 0.0
      %504 = vmatpush1.msra.mxu0 %v316
      %505 = vmatprep.subr.mxu0 0.0
      %506 = vmatpush1.msra.mxu0 %v317
      %507 = vmatprep.subr.mxu0 0.0
      %508 = vmatpush1.msra.mxu0 %v318
      %509 = vmatprep.subr.mxu0 0.0
      %510 = vmatpush1.msra.mxu0 %v319
      %511 = vmatprep.subr.mxu0 0.0
      %512 = vmatpush1.msra.mxu0 0.0
      %513 = vmatprep.subr.mxu0 0.0
      %514 = vmatpush1.msra.mxu0 0.0
      %515 = vmatprep.subr.mxu0 0.0
      %516 = vmatpush1.msra.mxu0 0.0
      %517 = vmatprep.subr.mxu0 0.0
      %518 = vmatpush1.msra.mxu0 0.0
      %519 = vmatprep.subr.mxu0 0.0
      %520 = vmatpush1.msra.mxu0 0.0
      %521 = vmatprep.subr.mxu0 0.0
      %522 = vmatpush1.msra.mxu0 0.0
      %523 = vmatprep.subr.mxu0 0.0
      %524 = vmatpush1.msra.mxu0 0.0
      %525 = vmatprep.subr.mxu0 0.0
      %526 = vmatpush1.msra.mxu0 0.0
      %527 = vmatprep.subr.mxu0 0.0
      %528 = vmatpush1.msra.mxu0 0.0
      %529 = vmatprep.subr.mxu0 0.0
      %530 = vmatpush1.msra.mxu0 0.0
      %531 = vmatprep.subr.mxu0 0.0
      %532 = vmatpush1.msra.mxu0 0.0
      %533 = vmatprep.subr.mxu0 0.0
      %534 = vmatpush1.msra.mxu0 0.0
      %535 = vmatprep.subr.mxu0 0.0
      %536 = vmatpush1.msra.mxu0 0.0
      %537 = vmatprep.subr.mxu0 0.0
      %538 = vmatpush1.msra.mxu0 0.0
      %539 = vmatprep.subr.mxu0 0.0
      %540 = vmatpush1.msra.mxu0 0.0
      %541 = vmatprep.subr.mxu0 0.0
      %542 = vmatpush1.msra.mxu0 0.0
      %543 = vmatprep.subr.mxu0 0.0
      %544 = vmatpush1.msra.mxu0 0.0
      %545 = vmatprep.subr.mxu0 0.0
      %546 = vmatpush1.msra.mxu0 0.0
      %547 = vmatprep.subr.mxu0 0.0
      %548 = vmatpush1.msra.mxu0 0.0
      %549 = vmatprep.subr.mxu0 0.0
      %550 = vmatpush1.msra.mxu0 0.0
      %551 = vmatprep.subr.mxu0 0.0
      %552 = vmatpush1.msra.mxu0 0.0
      %553 = vmatprep.subr.mxu0 0.0
      %554 = vmatpush1.msra.mxu0 0.0
      %555 = vmatprep.subr.mxu0 0.0
      %556 = vmatpush1.msra.mxu0 0.0
      %557 = vmatprep.subr.mxu0 0.0
      %558 = vmatpush1.msra.mxu0 0.0
      %559 = vmatprep.subr.mxu0 0.0
      %560 = vmatpush1.msra.mxu0 0.0
      %561 = vmatprep.subr.mxu0 0.0
      %562 = vmatpush1.msra.mxu0 0.0
      %563 = vmatprep.subr.mxu0 0.0
      %564 = vmatpush1.msra.mxu0 0.0
      %565 = vmatprep.subr.mxu0 0.0
      %566 = vmatpush1.msra.mxu0 0.0
      %567 = vmatprep.mubr.f32.mxu0 0.0
      %568 = vmatmul.mubr.f32.gmra.mrb[0].mxu0 %v498
      %v569 = vpop.f32.mrb[0].mxu0
      %v570 = vadd.f32 0.0, %v569
      %v571 = vpop.f32.mrb[0].mxu0
      %572 = vmatprep.mubr.f32.mxu0 0.0
      %573 = vmatmul.mubr.f32.gmra.mrb[0].mxu0 %v501
      %v574 = vpop.f32.mrb[0].mxu0
      %v575 = vadd.f32 0.0, %v574
      %v576 = vpop.f32.mrb[0].mxu0
      %577 = vdwg.mxu0
      %v578 = vadd.f32 %v489, %v570
      %v579 = vadd.f32 %v494, %v575
      %v580 = vlaneseq
      %v581 = vshrl.u32 %v580, 7
      %v582 = vsub.s32 0, %v581
      %v583 = vrot.slane %v320, %v582
      %v584 = vadd.f32 %v578, %v583
      %v585 = vadd.f32 %v579, %v583
      %v586 = vmax.f32 %v584, 0.0
      %v587 = vmax.f32 %v585, 0.0
      %v588 = vld [vmem:[%s2 + $0x3] sm:$0x1]
      %v589 = vld [vmem:[%s2 + $0x5] sm:$0x1]
      %v590 = vlaneseq
      %v591 = vshrl.u32 %v590, 7
      %v592 = vsub.s32 0, %v591
      %v593 = vrot.slane %v588, %v592
      %v594 = vmul.f32 %v586, %v593
      %v595 = vmul.f32 %v587, %v593
      %v596 = vlaneseq
      %v597 = vshrl.u32 %v596, 7
      %v598 = vsub.s32 0, %v597
      %v599 = vrot.slane %v589, %v598
      %v600 = vadd.f32 %v594, %v599
      %v601 = vadd.f32 %v595, %v599
      %v602 = vld [vmem:[%s1 + $0x80] sm:$0xff]
      %v603 = vld [vmem:[%s1 + $0x88] sm:$0xff]
      %v604 = vld [vmem:[%s1 + $0x90] sm:$0xff]
      %v605 = vld [vmem:[%s1 + $0x98] sm:$0xff]
      %v606 = vld [vmem:[%s1 + $0xa0] sm:$0xff]
      %v607 = vld [vmem:[%s1 + $0xa8] sm:$0xff]
      %v608 = vld [vmem:[%s1 + $0xb0] sm:$0xff]
      %v609 = vld [vmem:[%s1 + $0xb8] sm:$0xff]
      %v610 = vld [vmem:[%s1 + $0xc0] sm:$0xff]
      %v611 = vld [vmem:[%s1 + $0xc8] sm:$0xff]
      %v612 = vld [vmem:[%s1 + $0xd0] sm:$0xff]
      %v613 = vld [vmem:[%s1 + $0xd8] sm:$0xff]
      %v614 = vld [vmem:[%s2 + $0x2] sm:$0x1]
      %v615 = vrot.slane %v600, 7
      %v616 = vrot.slane %v601, 7
      %v617 = vsel %vm323, %v615, %v616
      %v618 = vsel %vm323, %v616, %v615
      %v619 = vmul.f32 %v300, %v618
      %v620 = vmul.f32 %v301, %v617
      %v621 = vrot.slane %v600, 1
      %v622 = vrot.slane %v601, 1
      %v623 = vsel %vm330, %v621, %v622
      %v624 = vsel %vm330, %v622, %v621
      %v625 = vmul.f32 %v306, %v623
      %v626 = vmul.f32 %v307, %v624
      %v628 = vsel %vm185, %v619, 0
      %v631 = vsel %vm185, %v620, 0
      %633 = vmatprep.subr.mxu0 0.0
      %634 = vmatpush1.msra.mxu0 %v602
      %635 = vmatprep.subr.mxu0 0.0
      %636 = vmatpush1.msra.mxu0 %v603
      %637 = vmatprep.subr.mxu0 0.0
      %638 = vmatpush1.msra.mxu0 %v604
      %639 = vmatprep.subr.mxu0 0.0
      %640 = vmatpush1.msra.mxu0 %v605
      %641 = vmatprep.subr.mxu0 0.0
      %642 = vmatpush1.msra.mxu0 0.0
      %643 = vmatprep.subr.mxu0 0.0
      %644 = vmatpush1.msra.mxu0 0.0
      %645 = vmatprep.subr.mxu0 0.0
      %646 = vmatpush1.msra.mxu0 0.0
      %647 = vmatprep.subr.mxu0 0.0
      %648 = vmatpush1.msra.mxu0 0.0
      %649 = vmatprep.subr.mxu0 0.0
      %650 = vmatpush1.msra.mxu0 0.0
      %651 = vmatprep.subr.mxu0 0.0
      %652 = vmatpush1.msra.mxu0 0.0
      %653 = vmatprep.subr.mxu0 0.0
      %654 = vmatpush1.msra.mxu0 0.0
      %655 = vmatprep.subr.mxu0 0.0
      %656 = vmatpush1.msra.mxu0 0.0
      %657 = vmatprep.subr.mxu0 0.0
      %658 = vmatpush1.msra.mxu0 0.0
      %659 = vmatprep.subr.mxu0 0.0
      %660 = vmatpush1.msra.mxu0 0.0
      %661 = vmatprep.subr.mxu0 0.0
      %662 = vmatpush1.msra.mxu0 0.0
      %663 = vmatprep.subr.mxu0 0.0
      %664 = vmatpush1.msra.mxu0 0.0
      %665 = vmatprep.subr.mxu0 0.0
      %666 = vmatpush1.msra.mxu0 0.0
      %667 = vmatprep.subr.mxu0 0.0
      %668 = vmatpush1.msra.mxu0 0.0
      %669 = vmatprep.subr.mxu0 0.0
      %670 = vmatpush1.msra.mxu0 0.0
      %671 = vmatprep.subr.mxu0 0.0
      %672 = vmatpush1.msra.mxu0 0.0
      %673 = vmatprep.subr.mxu0 0.0
      %674 = vmatpush1.msra.mxu0 0.0
      %675 = vmatprep.subr.mxu0 0.0
      %676 = vmatpush1.msra.mxu0 0.0
      %677 = vmatprep.subr.mxu0 0.0
      %678 = vmatpush1.msra.mxu0 0.0
      %679 = vmatprep.subr.mxu0 0.0
      %680 = vmatpush1.msra.mxu0 0.0
      %681 = vmatprep.subr.mxu0 0.0
      %682 = vmatpush1.msra.mxu0 0.0
      %683 = vmatprep.subr.mxu0 0.0
      %684 = vmatpush1.msra.mxu0 0.0
      %685 = vmatprep.subr.mxu0 0.0
      %686 = vmatpush1.msra.mxu0 0.0
      %687 = vmatprep.subr.mxu0 0.0
      %688 = vmatpush1.msra.mxu0 0.0
      %689 = vmatprep.subr.mxu0 0.0
      %690 = vmatpush1.msra.mxu0 0.0
      %691 = vmatprep.subr.mxu0 0.0
      %692 = vmatpush1.msra.mxu0 0.0
      %693 = vmatprep.subr.mxu0 0.0
      %694 = vmatpush1.msra.mxu0 0.0
      %695 = vmatprep.subr.mxu0 0.0
      %696 = vmatpush1.msra.mxu0 0.0
      %697 = vmatprep.mubr.f32.mxu0 0.0
      %698 = vmatmul.mubr.f32.gmra.mrb[0].mxu0 %v628
      %v699 = vpop.f32.mrb[0].mxu0
      %v700 = vadd.f32 0.0, %v699
      %v701 = vpop.f32.mrb[0].mxu0
      %702 = vmatprep.mubr.f32.mxu0 0.0
      %703 = vmatmul.mubr.f32.gmra.mrb[0].mxu0 %v631
      %v704 = vpop.f32.mrb[0].mxu0
      %v705 = vadd.f32 0.0, %v704
      %v706 = vpop.f32.mrb[0].mxu0
      %707 = vdwg.mxu0
      %v709 = vsel %vm185, %v600, 0
      %v712 = vsel %vm185, %v601, 0
      %714 = vmatprep.subr.mxu0 0.0
      %715 = vmatpush1.msra.mxu0 %v606
      %716 = vmatprep.subr.mxu0 0.0
      %717 = vmatpush1.msra.mxu0 %v607
      %718 = vmatprep.subr.mxu0 0.0
      %719 = vmatpush1.msra.mxu0 %v608
      %720 = vmatprep.subr.mxu0 0.0
      %721 = vmatpush1.msra.mxu0 %v609
      %722 = vmatprep.subr.mxu0 0.0
      %723 = vmatpush1.msra.mxu0 0.0
      %724 = vmatprep.subr.mxu0 0.0
      %725 = vmatpush1.msra.mxu0 0.0
      %726 = vmatprep.subr.mxu0 0.0
      %727 = vmatpush1.msra.mxu0 0.0
      %728 = vmatprep.subr.mxu0 0.0
      %729 = vmatpush1.msra.mxu0 0.0
      %730 = vmatprep.subr.mxu0 0.0
      %731 = vmatpush1.msra.mxu0 0.0
      %732 = vmatprep.subr.mxu0 0.0
      %733 = vmatpush1.msra.mxu0 0.0
      %734 = vmatprep.subr.mxu0 0.0
      %735 = vmatpush1.msra.mxu0 0.0
      %736 = vmatprep.subr.mxu0 0.0
      %737 = vmatpush1.msra.mxu0 0.0
      %738 = vmatprep.subr.mxu0 0.0
      %739 = vmatpush1.msra.mxu0 0.0
      %740 = vmatprep.subr.mxu0 0.0
      %741 = vmatpush1.msra.mxu0 0.0
      %742 = vmatprep.subr.mxu0 0.0
      %743 = vmatpush1.msra.mxu0 0.0
      %744 = vmatprep.subr.mxu0 0.0
      %745 = vmatpush1.msra.mxu0 0.0
      %746 = vmatprep.subr.mxu0 0.0
      %747 = vmatpush1.msra.mxu0 0.0
      %748 = vmatprep.subr.mxu0 0.0
      %749 = vmatpush1.msra.mxu0 0.0
      %750 = vmatprep.subr.mxu0 0.0
      %751 = vmatpush1.msra.mxu0 0.0
      %752 = vmatprep.subr.mxu0 0.0
      %753 = vmatpush1.msra.mxu0 0.0
      %754 = vmatprep.subr.mxu0 0.0
      %755 = vmatpush1.msra.mxu0 0.0
      %756 = vmatprep.subr.mxu0 0.0
      %757 = vmatpush1.msra.mxu0 0.0
      %758 = vmatprep.subr.mxu0 0.0
      %759 = vmatpush1.msra.mxu0 0.0
      %760 = vmatprep.subr.mxu0 0.0
      %761 = vmatpush1.msra.mxu0 0.0
      %762 = vmatprep.subr.mxu0 0.0
      %763 = vmatpush1.msra.mxu0 0.0
      %764 = vmatprep.subr.mxu0 0.0
      %765 = vmatpush1.msra.mxu0 0.0
      %766 = vmatprep.subr.mxu0 0.0
      %767 = vmatpush1.msra.mxu0 0.0
      %768 = vmatprep.subr.mxu0 0.0
      %769 = vmatpush1.msra.mxu0 0.0
      %770 = vmatprep.subr.mxu0 0.0
      %771 = vmatpush1.msra.mxu0 0.0
      %772 = vmatprep.subr.mxu0 0.0
      %773 = vmatpush1.msra.mxu0 0.0
      %774 = vmatprep.subr.mxu0 0.0
      %775 = vmatpush1.msra.mxu0 0.0
      %776 = vmatprep.subr.mxu0 0.0
      %777 = vmatpush1.msra.mxu0 0.0
      %778 = vmatprep.mubr.f32.mxu0 0.0
      %779 = vmatmul.mubr.f32.gmra.mrb[0].mxu0 %v709
      %v780 = vpop.f32.mrb[0].mxu0
      %v781 = vadd.f32 %v700, %v780
      %v782 = vpop.f32.mrb[0].mxu0
      %783 = vmatprep.mubr.f32.mxu0 0.0
      %784 = vmatmul.mubr.f32.gmra.mrb[0].mxu0 %v712
      %v785 = vpop.f32.mrb[0].mxu0
      %v786 = vadd.f32 %v705, %v785
      %v787 = vpop.f32.mrb[0].mxu0
      %788 = vdwg.mxu0
      %v790 = vsel %vm185, %v625, 0
      %v793 = vsel %vm185, %v626, 0
      %795 = vmatprep.subr.mxu0 0.0
      %796 = vmatpush1.msra.mxu0 %v610
      %797 = vmatprep.subr.mxu0 0.0
      %798 = vmatpush1.msra.mxu0 %v611
      %799 = vmatprep.subr.mxu0 0.0
      %800 = vmatpush1.msra.mxu0 %v612
      %801 = vmatprep.subr.mxu0 0.0
      %802 = vmatpush1.msra.mxu0 %v613
      %803 = vmatprep.subr.mxu0 0.0
      %804 = vmatpush1.msra.mxu0 0.0
      %805 = vmatprep.subr.mxu0 0.0
      %806 = vmatpush1.msra.mxu0 0.0
      %807 = vmatprep.subr.mxu0 0.0
      %808 = vmatpush1.msra.mxu0 0.0
      %809 = vmatprep.subr.mxu0 0.0
      %810 = vmatpush1.msra.mxu0 0.0
      %811 = vmatprep.subr.mxu0 0.0
      %812 = vmatpush1.msra.mxu0 0.0
      %813 = vmatprep.subr.mxu0 0.0
      %814 = vmatpush1.msra.mxu0 0.0
      %815 = vmatprep.subr.mxu0 0.0
      %816 = vmatpush1.msra.mxu0 0.0
      %817 = vmatprep.subr.mxu0 0.0
      %818 = vmatpush1.msra.mxu0 0.0
      %819 = vmatprep.subr.mxu0 0.0
      %820 = vmatpush1.msra.mxu0 0.0
      %821 = vmatprep.subr.mxu0 0.0
      %822 = vmatpush1.msra.mxu0 0.0
      %823 = vmatprep.subr.mxu0 0.0
      %824 = vmatpush1.msra.mxu0 0.0
      %825 = vmatprep.subr.mxu0 0.0
      %826 = vmatpush1.msra.mxu0 0.0
      %827 = vmatprep.subr.mxu0 0.0
      %828 = vmatpush1.msra.mxu0 0.0
      %829 = vmatprep.subr.mxu0 0.0
      %830 = vmatpush1.msra.mxu0 0.0
      %831 = vmatprep.subr.mxu0 0.0
      %832 = vmatpush1.msra.mxu0 0.0
      %833 = vmatprep.subr.mxu0 0.0
      %834 = vmatpush1.msra.mxu0 0.0
      %835 = vmatprep.subr.mxu0 0.0
      %836 = vmatpush1.msra.mxu0 0.0
      %837 = vmatprep.subr.mxu0 0.0
      %838 = vmatpush1.msra.mxu0 0.0
      %839 = vmatprep.subr.mxu0 0.0
      %840 = vmatpush1.msra.mxu0 0.0
      %841 = vmatprep.subr.mxu0 0.0
      %842 = vmatpush1.msra.mxu0 0.0
      %843 = vmatprep.subr.mxu0 0.0
      %844 = vmatpush1.msra.mxu0 0.0
      %845 = vmatprep.subr.mxu0 0.0
      %846 = vmatpush1.msra.mxu0 0.0
      %847 = vmatprep.subr.mxu0 0.0
      %848 = vmatpush1.msra.mxu0 0.0
      %849 = vmatprep.subr.mxu0 0.0
      %850 = vmatpush1.msra.mxu0 0.0
      %851 = vmatprep.subr.mxu0 0.0
      %852 = vmatpush1.msra.mxu0 0.0
      %853 = vmatprep.subr.mxu0 0.0
      %854 = vmatpush1.msra.mxu0 0.0
      %855 = vmatprep.subr.mxu0 0.0
      %856 = vmatpush1.msra.mxu0 0.0
      %857 = vmatprep.subr.mxu0 0.0
      %858 = vmatpush1.msra.mxu0 0.0
      %859 = vmatprep.mubr.f32.mxu0 0.0
      %860 = vmatmul.mubr.f32.gmra.mrb[0].mxu0 %v790
      %v861 = vpop.f32.mrb[0].mxu0
      %v862 = vadd.f32 0.0, %v861
      %v863 = vpop.f32.mrb[0].mxu0
      %864 = vmatprep.mubr.f32.mxu0 0.0
      %865 = vmatmul.mubr.f32.gmra.mrb[0].mxu0 %v793
      %v866 = vpop.f32.mrb[0].mxu0
      %v867 = vadd.f32 0.0, %v866
      %v868 = vpop.f32.mrb[0].mxu0
      %869 = vdwg.mxu0
      %v870 = vadd.f32 %v781, %v862
      %v871 = vadd.f32 %v786, %v867
      %v872 = vlaneseq
      %v873 = vshrl.u32 %v872, 7
      %v874 = vsub.s32 0, %v873
      %v875 = vrot.slane %v614, %v874
      %v876 = vadd.f32 %v870, %v875
      %v877 = vadd.f32 %v871, %v875
      %v878 = vmax.f32 %v876, 0.0
      %v879 = vmax.f32 %v877, 0.0
      %v880 = vld [vmem:[%s1 + $0xe0] sm:$0xff]
      %v881 = vld [vmem:[%s1 + $0xe8] sm:$0xff]
      %v882 = vld [vmem:[%s1 + $0xf0] sm:$0xff]
      %v883 = vld [vmem:[%s1 + $0xf8] sm:$0xff]
      %v884 = vld [vmem:[%s2 + $0x7] sm:$0x1]
      %v885 = vlaneseq
      %v886 = vshrl.u32 %v885, 7
      %v887 = vsub.s32 0, %v886
      %v888 = vrot.slane %v884, %v887
      %v890 = vsel %vm185, %v878, 0
      %v893 = vsel %vm185, %v879, 0
      %895 = vmatprep.subr.mxu0 0.0
      %896 = vmatpush1.msra.mxu0 %v880
      %897 = vmatprep.subr.mxu0 0.0
      %898 = vmatpush1.msra.mxu0 %v881
      %899 = vmatprep.subr.mxu0 0.0
      %900 = vmatpush1.msra.mxu0 %v882
      %901 = vmatprep.subr.mxu0 0.0
      %902 = vmatpush1.msra.mxu0 %v883
      %903 = vmatprep.subr.mxu0 0.0
      %904 = vmatpush1.msra.mxu0 0.0
      %905 = vmatprep.subr.mxu0 0.0
      %906 = vmatpush1.msra.mxu0 0.0
      %907 = vmatprep.subr.mxu0 0.0
      %908 = vmatpush1.msra.mxu0 0.0
      %909 = vmatprep.subr.mxu0 0.0
      %910 = vmatpush1.msra.mxu0 0.0
      %911 = vmatprep.subr.mxu0 0.0
      %912 = vmatpush1.msra.mxu0 0.0
      %913 = vmatprep.subr.mxu0 0.0
      %914 = vmatpush1.msra.mxu0 0.0
      %915 = vmatprep.subr.mxu0 0.0
      %916 = vmatpush1.msra.mxu0 0.0
      %917 = vmatprep.subr.mxu0 0.0
      %918 = vmatpush1.msra.mxu0 0.0
      %919 = vmatprep.subr.mxu0 0.0
      %920 = vmatpush1.msra.mxu0 0.0
      %921 = vmatprep.subr.mxu0 0.0
      %922 = vmatpush1.msra.mxu0 0.0
      %923 = vmatprep.subr.mxu0 0.0
      %924 = vmatpush1.msra.mxu0 0.0
      %925 = vmatprep.subr.mxu0 0.0
      %926 = vmatpush1.msra.mxu0 0.0
      %927 = vmatprep.subr.mxu0 0.0
      %928 = vmatpush1.msra.mxu0 0.0
      %929 = vmatprep.subr.mxu0 0.0
      %930 = vmatpush1.msra.mxu0 0.0
      %931 = vmatprep.subr.mxu0 0.0
      %932 = vmatpush1.msra.mxu0 0.0
      %933 = vmatprep.subr.mxu0 0.0
      %934 = vmatpush1.msra.mxu0 0.0
      %935 = vmatprep.subr.mxu0 0.0
      %936 = vmatpush1.msra.mxu0 0.0
      %937 = vmatprep.subr.mxu0 0.0
      %938 = vmatpush1.msra.mxu0 0.0
      %939 = vmatprep.subr.mxu0 0.0
      %940 = vmatpush1.msra.mxu0 0.0
      %941 = vmatprep.subr.mxu0 0.0
      %942 = vmatpush1.msra.mxu0 0.0
      %943 = vmatprep.subr.mxu0 0.0
      %944 = vmatpush1.msra.mxu0 0.0
      %945 = vmatprep.subr.mxu0 0.0
      %946 = vmatpush1.msra.mxu0 0.0
      %947 = vmatprep.subr.mxu0 0.0
      %948 = vmatpush1.msra.mxu0 0.0
      %949 = vmatprep.subr.mxu0 0.0
      %950 = vmatpush1.msra.mxu0 0.0
      %951 = vmatprep.subr.mxu0 0.0
      %952 = vmatpush1.msra.mxu0 0.0
      %953 = vmatprep.subr.mxu0 0.0
      %954 = vmatpush1.msra.mxu0 0.0
      %955 = vmatprep.subr.mxu0 0.0
      %956 = vmatpush1.msra.mxu0 0.0
      %957 = vmatprep.subr.mxu0 0.0
      %958 = vmatpush1.msra.mxu0 0.0
      %959 = vmatprep.mubr.f32.mxu0 0.0
      %960 = vmatmul.mubr.f32.gmra.mrb[0].mxu0 %v890
      %v961 = vpop.f32.mrb[0].mxu0
      %v962 = vadd.f32 %v888, %v961
      %v963 = vpop.f32.mrb[0].mxu0
      %964 = vmatprep.mubr.f32.mxu0 0.0
      %965 = vmatmul.mubr.f32.gmra.mrb[0].mxu0 %v893
      %v966 = vpop.f32.mrb[0].mxu0
      %v967 = vadd.f32 %v888, %v966
      %v968 = vpop.f32.mrb[0].mxu0
      %969 = vdwg.mxu0
      %vm970 = vcmask 130048
      %971 = vst.msk [vmem:[%s172] sm:$0xff] %vm970, %v962
      %972 = vst.msk [vmem:[%s172 + $0x8] sm:$0xff] %vm970, %v967
      %s973 = smul.u32 2, %s14
      %p974 = scmp.lt.s32.totalorder %s973, 3
      %s975 = scalar_select %p974, %s973, 3
      %s976 = smul.addr %s975, 8
      %s977 = scalar_lea.vmem %s3, %s976
      // Predicated region
      $region33: #{tpu_custom_call.1} parent=31 // pred_check
        %p978 = pneg %p100
      $region34: #{tpu_custom_call.1} parent=31 // pred_check_branch
        %980 = sbr.rel (%p978) target = $region36
      $region35: #{tpu_custom_call.1} parent=31 // pred_region
        %s981 = smul.u32 2, %s14
      $region36: #{tpu_custom_call.1} parent=31 // pred_fallthru
        _
    $region32: #{tpu_custom_call.1} parent=5 // pred_fallthru
      _
    %p982 = scmp.le.s32.totalorder 2, %s9
    // Predicated region
    $region37: #{tpu_custom_call.1} parent=5 // pred_check
      %p983 = pneg %p982
    $region38: #{tpu_custom_call.1} parent=5 // pred_check_branch
      %985 = sbr.rel (%p983) target = $region40
    $region39: #{tpu_custom_call.1} parent=5 // pred_region
      %s986 = ssub.s32 %s9, 2
      // Predicated region
      $region41: #{tpu_custom_call.1} parent=39 // pred_check
        %p987 = pneg %p106
      $region42: #{tpu_custom_call.1} parent=39 // pred_check_branch
        %989 = sbr.rel (%p987) target = $region44
      $region43: #{tpu_custom_call.1} parent=39 // pred_region
        %s990 = smul.u32 2, %s15
        %p991 = scmp.lt.s32.totalorder %s990, 3
        %s992 = scalar_select %p991, %s990, 3
        %s993 = smul.addr %s992, 8
        %s994 = scalar_lea.vmem %s3, %s993
      $region44: #{tpu_custom_call.1} parent=39 // pred_fallthru
        _
    $region40: #{tpu_custom_call.1} parent=5 // pred_fallthru
      _
  $region6: #{tpu_custom_call.1} parent=0 // loop_footer
    %s13 = sadd.s32 1, %s9
  $region7: #{tpu_custom_call.1} parent=0 // loop_footer_branch
    %8 = sbr.rel target = $region3
  $region8: #{tpu_custom_call.1} parent=0 // loop_exit
    _

</llo_original>
